<compile_context>
chip_gen: v7x
topology: tpu7x:2x2x1
jax: 0.10.0
libtpu: 0.0.40
codegen_flags: <defaults>
</compile_context>

<pallas_src>
import functools

import jax
import jax.numpy as jnp
from jax.experimental import pallas as pl
from jax.experimental.pallas import tpu as pltpu


_VMEM_SOFT_BUDGET = 24 * 1024 * 1024  # stay under v7x's 32 MiB scoped default


def _round_up(x, m):
    return (x + m - 1) // m * m


def _mlp_kernel(x_ref, w1_ref, b1_ref, w2_ref, b2_ref, o_ref):
    # w1: (D_in, H), w2: (H, D_out) -- pre-transposed in the wrapper, so both
    # dots are standard last-dim-of-LHS x first-dim-of-RHS contractions
    # (transpose-free MXU feed).
    x = x_ref[...]                                                   # (bm, D_in)
    h = jnp.dot(x, w1_ref[...], preferred_element_type=jnp.float32)  # (bm, H) f32
    h = jnp.maximum(h + b1_ref[...], 0.0)                            # f32 epilogue
    y = jnp.dot(h.astype(w2_ref.dtype), w2_ref[...],
                preferred_element_type=jnp.float32)                  # (bm, D_out) f32
    y = jnp.maximum(y + b2_ref[...], 0.0)
    o_ref[...] = y.astype(o_ref.dtype)


@functools.partial(jax.jit, static_argnames=("block_m", "compute_dtype"))
def policy_forward(x, w1, b1, w2, b2, *, block_m=None, compute_dtype=None):
    """Fused MLP forward (y = relu(relu(x @ W1.T + b1) @ W2.T + b2)).

    block_m=None -> auto: single kernel invocation (all operands resident in
    VMEM) for small batches, otherwise batch-tiled with ~2048-4096-row tiles
    and >=2 grid steps (v7x megacore). compute_dtype=jnp.bfloat16 recommended
    for production (f32 accumulation + epilogue preserved).
    """
    B, D_in = x.shape
    H, _ = w1.shape
    D_out, _ = w2.shape
    out_dtype = x.dtype
    if compute_dtype is None:
        compute_dtype = x.dtype

    # One-time wrapper-side transpose + (optional) bf16 cast of the MXU operands.
    w1_t = w1.T.astype(compute_dtype)            # (D_in, H)
    w2_t = w2.T.astype(compute_dtype)            # (H, D_out)
    xc = x.astype(compute_dtype)
    b1_2d = b1.reshape(1, H).astype(jnp.float32)
    b2_2d = b2.reshape(1, D_out).astype(jnp.float32)

    comp_bytes = jnp.dtype(compute_dtype).itemsize
    out_bytes = jnp.dtype(out_dtype).itemsize

    def _vmem_estimate(rows):
        # Conservative: pad every last dim to a full 128-lane tile.
        lane = lambda n: _round_up(n, 128)
        return (rows * lane(D_in) * comp_bytes          # x tile
                + rows * lane(H) * 4                    # f32 hidden activation
                + rows * lane(D_out) * 4                # f32 y before cast
                + rows * lane(D_out) * out_bytes        # out tile
                + (D_in * lane(H) + H * lane(D_out)) * comp_bytes   # weights
                + (lane(H) + lane(D_out)) * 4)          # biases

    # ---- auto block_m selection -------------------------------------------
    if block_m is None:
        if B <= 1024 and _vmem_estimate(B) <= _VMEM_SOFT_BUDGET:
            block_m = B  # whole problem in one invocation
        else:
            # ~2-4K-row tiles (>=85% of HBM roofline measured at >=512 rows),
            # and at least 2 grid steps so both v7x TensorCores get work.
            block_m = min(4096, _round_up(pl.cdiv(B, 2), 8))
    block_m = _round_up(block_m, 8)

    # ---- single-invocation path (everything resident in VMEM) --------------
    if block_m >= B:
        needed = _vmem_estimate(B)
        compiler_params = None
        if needed > 8 * 1024 * 1024:
            compiler_params = pltpu.CompilerParams(
                vmem_limit_bytes=int(min(max(2 * needed, 16 * 1024 * 1024),
                                         30 * 1024 * 1024)))
        return pl.pallas_call(
            _mlp_kernel,
            out_shape=jax.ShapeDtypeStruct((B, D_out), out_dtype),
            in_specs=[pl.BlockSpec(memory_space=pltpu.MemorySpace.VMEM)] * 5,
            out_specs=pl.BlockSpec(memory_space=pltpu.MemorySpace.VMEM),
            compiler_params=compiler_params,
        )(xc, w1_t, b1_2d, w2_t, b2_2d)

    # ---- tiled path: tile only the batch dimension --------------------------
    grid_b = pl.cdiv(B, block_m)
    b_pad = grid_b * block_m
    if b_pad != B:
        xc = jnp.pad(xc, ((0, b_pad - B), (0, 0)))  # ragged batch -> pad, slice later

    # Deeper pipelining on the streamed x input only when the grid is deep
    # enough to use it; weights/biases are replicated and single-buffered.
    x_buffering = pl.Buffered(3) if grid_b >= 3 else pl.Buffered(2)

    out = pl.pallas_call(
        _mlp_kernel,
        out_shape=jax.ShapeDtypeStruct((b_pad, D_out), out_dtype),
        grid_spec=pltpu.PrefetchScalarGridSpec(
            num_scalar_prefetch=0,
            grid=(grid_b,),
            in_specs=[
                pl.BlockSpec((block_m, D_in), lambda i: (i, 0),
                             pipeline_mode=x_buffering),           # x: batch-tiled
                pl.BlockSpec((D_in, H), lambda i: (0, 0),
                             pipeline_mode=pl.Buffered(1)),        # W1^T replicated
                pl.BlockSpec((1, H), lambda i: (0, 0),
                             pipeline_mode=pl.Buffered(1)),        # b1 replicated
                pl.BlockSpec((H, D_out), lambda i: (0, 0),
                             pipeline_mode=pl.Buffered(1)),        # W2^T replicated
                pl.BlockSpec((1, D_out), lambda i: (0, 0),
                             pipeline_mode=pl.Buffered(1)),        # b2 replicated
            ],
            out_specs=pl.BlockSpec((block_m, D_out), lambda i: (i, 0)),
        ),
        compiler_params=pltpu.CompilerParams(
            dimension_semantics=("parallel",)),
    )(xc, w1_t, b1_2d, w2_t, b2_2d)

    return out[:B] if b_pad != B else out


def _init_linear(key, out_features, in_features, dtype=jnp.float32):
    # PyTorch nn.Linear default init: U(-1/sqrt(fan_in), 1/sqrt(fan_in)).
    kw, kb = jax.random.split(key)
    bound = 1.0 / jnp.sqrt(jnp.asarray(in_features, dtype))
    w = jax.random.uniform(kw, (out_features, in_features), dtype,
                           minval=-bound, maxval=bound)
    b = jax.random.uniform(kb, (out_features,), dtype,
                           minval=-bound, maxval=bound)
    return w, b


def _reference_forward(x, w1, b1, w2, b2):
    h = jnp.maximum(x @ w1.T + b1, 0.0)
    return jnp.maximum(h @ w2.T + b2, 0.0)


if __name__ == "__main__":
    # Shapes implied by policy(input, hidden, output): batch=16, input=32,
    # hidden=64, output=16.
    key = jax.random.PRNGKey(0)
    k_x, k_l1, k_l2 = jax.random.split(key, 3)

    B, D_IN, HID, D_OUT = 16, 32, 64, 16
    x = jax.random.normal(k_x, (B, D_IN), jnp.float32)
    w1, b1 = _init_linear(k_l1, HID, D_IN)
    w2, b2 = _init_linear(k_l2, D_OUT, HID)

    ref = _reference_forward(x, w1, b1, w2, b2)

    # 1) f32 operands, auto path (single invocation, all in VMEM): tight check.
    out_f32 = jax.block_until_ready(
        policy_forward(x, w1, b1, w2, b2, compute_dtype=jnp.float32))
    assert out_f32.shape == (B, D_OUT)
    assert jnp.allclose(out_f32, ref, atol=1e-5, rtol=1e-5), "f32 mismatch"

    # 2) bf16 MXU operands (production default), f32 accumulation/epilogue:
    #    looser tolerance vs the f32 reference due to the bf16 cast.
    out_bf16 = jax.block_until_ready(
        policy_forward(x, w1, b1, w2, b2, compute_dtype=jnp.bfloat16))
    assert out_bf16.shape == (B, D_OUT)
    assert jnp.allclose(out_bf16, ref, atol=5e-2, rtol=5e-2), "bf16 mismatch"

    # 3) Batch-tiled path (2 grid steps) to exercise the pipelined branch.
    out_tiled = jax.block_until_ready(
        policy_forward(x, w1, b1, w2, b2, block_m=8, compute_dtype=jnp.float32))
    assert jnp.allclose(out_tiled, ref, atol=1e-5, rtol=1e-5), "tiled mismatch"

    print("KERNEL_OK")
</pallas_src>

<mosaic_0001>
module attributes {stable_mosaic.version = 11 : i64} {
  func.func @_mlp_kernel(%arg0: memref<16x32xf32, #tpu.memory_space<vmem>>, %arg1: memref<32x64xf32, #tpu.memory_space<vmem>>, %arg2: memref<1x64xf32, #tpu.memory_space<vmem>>, %arg3: memref<64x16xf32, #tpu.memory_space<vmem>>, %arg4: memref<1x16xf32, #tpu.memory_space<vmem>>, %arg5: memref<16x16xf32, #tpu.memory_space<vmem>>) attributes {dimension_semantics = [], scalar_prefetch = 0 : i64, scratch_operands = 0 : i64, tpu.core_type = #tpu.core_type<tc>} {
    %c0 = arith.constant 0 : index
    %c0_0 = arith.constant 0 : index
    %0 = vector.load %arg0[%c0, %c0_0] : memref<16x32xf32, #tpu.memory_space<vmem>>, vector<16x32xf32>
    %c0_1 = arith.constant 0 : index
    %c0_2 = arith.constant 0 : index
    %1 = vector.load %arg1[%c0_1, %c0_2] : memref<32x64xf32, #tpu.memory_space<vmem>>, vector<32x64xf32>
    %cst = arith.constant dense<0.000000e+00> : vector<16x64xf32>
    %2 = tpu.matmul %0, %1, %cst {dimension_numbers = #tpu.dot_dimension_numbers<[1], [0], [0], [1], [0, 0, 1, 1], [], []>} : vector<16x32xf32>, vector<32x64xf32>, vector<16x64xf32> -> vector<16x64xf32>
    %c0_3 = arith.constant 0 : index
    %c0_4 = arith.constant 0 : index
    %3 = vector.load %arg2[%c0_3, %c0_4] : memref<1x64xf32, #tpu.memory_space<vmem>>, vector<1x64xf32>
    %4 = vector.broadcast %3 : vector<1x64xf32> to vector<16x64xf32>
    %5 = arith.addf %2, %4 : vector<16x64xf32>
    %cst_5 = arith.constant 0.000000e+00 : f32
    %6 = vector.broadcast %cst_5 : f32 to vector<16x64xf32>
    %7 = arith.maximumf %5, %6 : vector<16x64xf32>
    %c0_6 = arith.constant 0 : index
    %c0_7 = arith.constant 0 : index
    %8 = vector.load %arg3[%c0_6, %c0_7] : memref<64x16xf32, #tpu.memory_space<vmem>>, vector<64x16xf32>
    %cst_8 = arith.constant dense<0.000000e+00> : vector<16x16xf32>
    %9 = tpu.matmul %7, %8, %cst_8 {dimension_numbers = #tpu.dot_dimension_numbers<[1], [0], [0], [1], [0, 0, 1, 1], [], []>} : vector<16x64xf32>, vector<64x16xf32>, vector<16x16xf32> -> vector<16x16xf32>
    %c0_9 = arith.constant 0 : index
    %c0_10 = arith.constant 0 : index
    %10 = vector.load %arg4[%c0_9, %c0_10] : memref<1x16xf32, #tpu.memory_space<vmem>>, vector<1x16xf32>
    %11 = vector.broadcast %10 : vector<1x16xf32> to vector<16x16xf32>
    %12 = arith.addf %9, %11 : vector<16x16xf32>
    %cst_11 = arith.constant 0.000000e+00 : f32
    %13 = vector.broadcast %cst_11 : f32 to vector<16x16xf32>
    %14 = arith.maximumf %12, %13 : vector<16x16xf32>
    %c0_12 = arith.constant 0 : index
    %c0_13 = arith.constant 0 : index
    %15 = vector.load %arg5[%c0_12, %c0_13] : memref<16x16xf32, #tpu.memory_space<vmem>>, vector<16x16xf32>
    tpu.vector_store %arg5[%c0_12, %c0_13], %14 {strides = array<i32>} : memref<16x16xf32, #tpu.memory_space<vmem>>, vector<16x16xf32>,
    return
  }
}

</mosaic_0001>

<llo_original>
// kernel: policy_forward.1
$region0: #{policy_forward.1}
  #allocation0 [shape = 'u32[]', space=smem, size = 0x4, offset = 0x4, fixed_abs, tag = 'smem constant byte address 0x4 - core index']
  #allocation1 [shape = 'u32[144,128]{1,0:T(1,128)}', space=vmem, size = 0x12000, scoped, tag = 'internal scratch']
  %s0 = inlined_call_operand.vmem [shape: f32[16,32], index: 0, kind: input, shape index: {}]
  %s1 = inlined_call_operand.vmem [shape: f32[32,64], index: 1, kind: input, shape index: {}]
  %s2 = inlined_call_operand.vmem [shape: f32[1,64], index: 2, kind: input, shape index: {}]
  %s3 = inlined_call_operand.vmem [shape: f32[64,16], index: 3, kind: input, shape index: {}]
  %s4 = inlined_call_operand.vmem [shape: f32[1,16], index: 4, kind: input, shape index: {}]
  %s5 = inlined_call_operand.hbm [shape: f32[16,16], index: 5, kind: output, shape index: {}]
  %s6 = sld [smem:[#allocation0]]
  $region30: #{policy_forward.1} parent=0
    _
  %s8 = ssub.s32 1, %s6
  %s9 = scalar_select 0, %s8, %s6
  $region1: #{policy_forward.1} parent=0
    #allocation2 [shape = 'u8[8192]{0}', space=vmem, size = 0x2000, scoped, tag = 'output window, operand 0, single buffered']
    #allocation3 [shape = 's32[1]{0}', space=sflag, size = 0x4, scoped, tag = 'scoped memory for policy_forward.1']
    %10 = vsyncpa [#allocation3], 0
    // Predicated region
    $region2: #{policy_forward.1} parent=1 // pred_check
      _
    $region3: #{policy_forward.1} parent=1 // pred_check_branch
      %12 = sbr.rel (0) target = $region5
    $region4: #{policy_forward.1} parent=1 // pred_region
      _
    $region5: #{policy_forward.1} parent=1 // pred_fallthru
      _
    // Predicated region
    $region6: #{policy_forward.1} parent=1 // pred_check
      _
    $region7: #{policy_forward.1} parent=1 // pred_check_branch
      %14 = sbr.rel (0) target = $region9
    $region8: #{policy_forward.1} parent=1 // pred_region
      _
    $region9: #{policy_forward.1} parent=1 // pred_fallthru
      _
    // Predicated region
    $region10: #{policy_forward.1} parent=1 // pred_check
      _
    $region11: #{policy_forward.1} parent=1 // pred_check_branch
      %16 = sbr.rel (0) target = $region13
    $region12: #{policy_forward.1} parent=1 // pred_region
      _
    $region13: #{policy_forward.1} parent=1 // pred_fallthru
      _
    // Predicated region
    $region14: #{policy_forward.1} parent=1 // pred_check
      _
    $region15: #{policy_forward.1} parent=1 // pred_check_branch
      %18 = sbr.rel (0) target = $region17
    $region16: #{policy_forward.1} parent=1 // pred_region
      _
    $region17: #{policy_forward.1} parent=1 // pred_fallthru
      _
    // Predicated region
    $region18: #{policy_forward.1} parent=1 // pred_check
      _
    $region19: #{policy_forward.1} parent=1 // pred_check_branch
      %20 = sbr.rel (0) target = $region21
    $region20: #{policy_forward.1} parent=1 // pred_region
      _
    $region21: #{policy_forward.1} parent=1 // pred_fallthru
      _
    %v21 = vld [vmem:[%s0] sm:$0xff]
    %v22 = vld [vmem:[%s0 + $0x8] sm:$0xff]
    %v23 = vld [vmem:[%s1] sm:$0xff]
    %v24 = vld [vmem:[%s1 + $0x8] sm:$0xff]
    %v25 = vld [vmem:[%s1 + $0x10] sm:$0xff]
    %v26 = vld [vmem:[%s1 + $0x18] sm:$0xff]
    %v27 = vld [vmem:[%s2] sm:$0x1]
    %v29 = vlaneseq
    %v30 = vshrl.u32 %v29, 7
    %v31 = vsub.s32 0, %v30
    %v32 = vrot.slane %v27, %v31
    %vm34 = vcmask 261120
    %v36 = vsel %vm34, %v21, 0
    %v39 = vsel %vm34, %v22, 0
    %41 = vmatprep.subr.mxu0 0.0
    %42 = vmatpush1.msra.mxu0 %v23
    %43 = vmatprep.subr.mxu0 0.0
    %44 = vmatpush1.msra.mxu0 %v24
    %45 = vmatprep.subr.mxu0 0.0
    %46 = vmatpush1.msra.mxu0 %v25
    %47 = vmatprep.subr.mxu0 0.0
    %48 = vmatpush1.msra.mxu0 %v26
    %49 = vmatprep.subr.mxu0 0.0
    %50 = vmatpush1.msra.mxu0 0.0
    %51 = vmatprep.subr.mxu0 0.0
    %52 = vmatpush1.msra.mxu0 0.0
    %53 = vmatprep.subr.mxu0 0.0
    %54 = vmatpush1.msra.mxu0 0.0
    %55 = vmatprep.subr.mxu0 0.0
    %56 = vmatpush1.msra.mxu0 0.0
    %57 = vmatprep.subr.mxu0 0.0
    %58 = vmatpush1.msra.mxu0 0.0
    %59 = vmatprep.subr.mxu0 0.0
    %60 = vmatpush1.msra.mxu0 0.0
    %61 = vmatprep.subr.mxu0 0.0
    %62 = vmatpush1.msra.mxu0 0.0
    %63 = vmatprep.subr.mxu0 0.0
    %64 = vmatpush1.msra.mxu0 0.0
    %65 = vmatprep.subr.mxu0 0.0
    %66 = vmatpush1.msra.mxu0 0.0
    %67 = vmatprep.subr.mxu0 0.0
    %68 = vmatpush1.msra.mxu0 0.0
    %69 = vmatprep.subr.mxu0 0.0
    %70 = vmatpush1.msra.mxu0 0.0
    %71 = vmatprep.subr.mxu0 0.0
    %72 = vmatpush1.msra.mxu0 0.0
    %73 = vmatprep.subr.mxu0 0.0
    %74 = vmatpush1.msra.mxu0 0.0
    %75 = vmatprep.subr.mxu0 0.0
    %76 = vmatpush1.msra.mxu0 0.0
    %77 = vmatprep.subr.mxu0 0.0
    %78 = vmatpush1.msra.mxu0 0.0
    %79 = vmatprep.subr.mxu0 0.0
    %80 = vmatpush1.msra.mxu0 0.0
    %81 = vmatprep.subr.mxu0 0.0
    %82 = vmatpush1.msra.mxu0 0.0
    %83 = vmatprep.subr.mxu0 0.0
    %84 = vmatpush1.msra.mxu0 0.0
    %85 = vmatprep.subr.mxu0 0.0
    %86 = vmatpush1.msra.mxu0 0.0
    %87 = vmatprep.subr.mxu0 0.0
    %88 = vmatpush1.msra.mxu0 0.0
    %89 = vmatprep.subr.mxu0 0.0
    %90 = vmatpush1.msra.mxu0 0.0
    %91 = vmatprep.subr.mxu0 0.0
    %92 = vmatpush1.msra.mxu0 0.0
    %93 = vmatprep.subr.mxu0 0.0
    %94 = vmatpush1.msra.mxu0 0.0
    %95 = vmatprep.subr.mxu0 0.0
    %96 = vmatpush1.msra.mxu0 0.0
    %97 = vmatprep.subr.mxu0 0.0
    %98 = vmatpush1.msra.mxu0 0.0
    %99 = vmatprep.subr.mxu0 0.0
    %100 = vmatpush1.msra.mxu0 0.0
    %101 = vmatprep.subr.mxu0 0.0
    %102 = vmatpush1.msra.mxu0 0.0
    %103 = vmatprep.subr.mxu0 0.0
    %104 = vmatpush1.msra.mxu0 0.0
    %105 = vmatprep.mubr.f32.mxu0 0.0
    %106 = vmatmul.mubr.f32.gmra.mrb[0].mxu0 %v36
    %v107 = vpop.f32.mrb[0].mxu0
    %v108 = vadd.f32 %v32, %v107
    %v109 = vpop.f32.mrb[0].mxu0
    %110 = vmatprep.mubr.f32.mxu0 0.0
    %111 = vmatmul.mubr.f32.gmra.mrb[0].mxu0 %v39
    %v112 = vpop.f32.mrb[0].mxu0
    %v113 = vadd.f32 %v32, %v112
    %v114 = vpop.f32.mrb[0].mxu0
    %115 = vdwg.mxu0
    %v116 = vmax.f32 %v108, 0.0
    %v117 = vmax.f32 %v113, 0.0
    %v118 = vld [vmem:[%s3] sm:$0xff]
    %v119 = vld [vmem:[%s3 + $0x8] sm:$0xff]
    %v120 = vld [vmem:[%s3 + $0x10] sm:$0xff]
    %v121 = vld [vmem:[%s3 + $0x18] sm:$0xff]
    %v122 = vld [vmem:[%s3 + $0x20] sm:$0xff]
    %v123 = vld [vmem:[%s3 + $0x28] sm:$0xff]
    %v124 = vld [vmem:[%s3 + $0x30] sm:$0xff]
    %v125 = vld [vmem:[%s3 + $0x38] sm:$0xff]
    %v126 = vld [vmem:[%s4] sm:$0x1]
    %v128 = vlaneseq
    %v129 = vshrl.u32 %v128, 7
    %v130 = vsub.s32 0, %v129
    %v131 = vrot.slane %v126, %v130
    %vm133 = vcmask 523264
    %v135 = vsel %vm133, %v116, 0
    %v138 = vsel %vm133, %v117, 0
    %140 = vmatprep.subr.mxu0 0.0
    %141 = vmatpush1.msra.mxu0 %v118
    %142 = vmatprep.subr.mxu0 0.0
    %143 = vmatpush1.msra.mxu0 %v119
    %144 = vmatprep.subr.mxu0 0.0
    %145 = vmatpush1.msra.mxu0 %v120
    %146 = vmatprep.subr.mxu0 0.0
    %147 = vmatpush1.msra.mxu0 %v121
    %148 = vmatprep.subr.mxu0 0.0
    %149 = vmatpush1.msra.mxu0 %v122
    %150 = vmatprep.subr.mxu0 0.0
    %151 = vmatpush1.msra.mxu0 %v123
    %152 = vmatprep.subr.mxu0 0.0
    %153 = vmatpush1.msra.mxu0 %v124
    %154 = vmatprep.subr.mxu0 0.0
    %155 = vmatpush1.msra.mxu0 %v125
    %156 = vmatprep.subr.mxu0 0.0
    %157 = vmatpush1.msra.mxu0 0.0
    %158 = vmatprep.subr.mxu0 0.0
    %159 = vmatpush1.msra.mxu0 0.0
    %160 = vmatprep.subr.mxu0 0.0
    %161 = vmatpush1.msra.mxu0 0.0
    %162 = vmatprep.subr.mxu0 0.0
    %163 = vmatpush1.msra.mxu0 0.0
    %164 = vmatprep.subr.mxu0 0.0
    %165 = vmatpush1.msra.mxu0 0.0
    %166 = vmatprep.subr.mxu0 0.0
    %167 = vmatpush1.msra.mxu0 0.0
    %168 = vmatprep.subr.mxu0 0.0
    %169 = vmatpush1.msra.mxu0 0.0
    %170 = vmatprep.subr.mxu0 0.0
    %171 = vmatpush1.msra.mxu0 0.0
    %172 = vmatprep.subr.mxu0 0.0
    %173 = vmatpush1.msra.mxu0 0.0
    %174 = vmatprep.subr.mxu0 0.0
    %175 = vmatpush1.msra.mxu0 0.0
    %176 = vmatprep.subr.mxu0 0.0
    %177 = vmatpush1.msra.mxu0 0.0
    %178 = vmatprep.subr.mxu0 0.0
    %179 = vmatpush1.msra.mxu0 0.0
    %180 = vmatprep.subr.mxu0 0.0
    %181 = vmatpush1.msra.mxu0 0.0
    %182 = vmatprep.subr.mxu0 0.0
    %183 = vmatpush1.msra.mxu0 0.0
    %184 = vmatprep.subr.mxu0 0.0
    %185 = vmatpush1.msra.mxu0 0.0
    %186 = vmatprep.subr.mxu0 0.0
    %187 = vmatpush1.msra.mxu0 0.0
    %188 = vmatprep.subr.mxu0 0.0
    %189 = vmatpush1.msra.mxu0 0.0
    %190 = vmatprep.subr.mxu0 0.0
    %191 = vmatpush1.msra.mxu0 0.0
    %192 = vmatprep.subr.mxu0 0.0
    %193 = vmatpush1.msra.mxu0 0.0
    %194 = vmatprep.subr.mxu0 0.0
    %195 = vmatpush1.msra.mxu0 0.0
    %196 = vmatprep.subr.mxu0 0.0
    %197 = vmatpush1.msra.mxu0 0.0
    %198 = vmatprep.subr.mxu0 0.0
    %199 = vmatpush1.msra.mxu0 0.0
    %200 = vmatprep.subr.mxu0 0.0
    %201 = vmatpush1.msra.mxu0 0.0
    %202 = vmatprep.subr.mxu0 0.0
    %203 = vmatpush1.msra.mxu0 0.0
    %204 = vmatprep.mubr.f32.mxu0 0.0
    %205 = vmatmul.mubr.f32.gmra.mrb[0].mxu0 %v135
    %v206 = vpop.f32.mrb[0].mxu0
    %v207 = vadd.f32 %v131, %v206
    %v208 = vpop.f32.mrb[0].mxu0
    %209 = vmatprep.mubr.f32.mxu0 0.0
    %210 = vmatmul.mubr.f32.gmra.mrb[0].mxu0 %v138
    %v211 = vpop.f32.mrb[0].mxu0
    %v212 = vadd.f32 %v131, %v211
    %v213 = vpop.f32.mrb[0].mxu0
    %214 = vdwg.mxu0
    %v215 = vmax.f32 %v207, 0.0
    %v216 = vmax.f32 %v212, 0.0
    %vm217 = vcmask 130048
    %218 = vst.msk [vmem:[#allocation2] sm:$0xff] %vm217, %v215
    %219 = vst.msk [vmem:[#allocation2 + $0x8] sm:$0xff] %vm217, %v216
    // Predicated region
    $region22: #{policy_forward.1} parent=1 // pred_check
      _
    $region23: #{policy_forward.1} parent=1 // pred_check_branch
      %221 = sbr.rel (0) target = $region25
    $region24: #{policy_forward.1} parent=1 // pred_region
      %s223 = ssub.s32 256, 256
      %224 = vsyncadd [#allocation3], %s223
      %s225 = sshll.u32 [#allocation2], 4
      %s226 = int_to_ptr.vmem [resolvable:$true] %s225
      %231 = dma.vmem_to_hbm [thread:$0]  %s226, 256, %s5, [#allocation3], 128, 128, 8
    $region25: #{policy_forward.1} parent=1 // pred_fallthru
      _
    // Predicated region
    $region26: #{policy_forward.1} parent=1 // pred_check
      _
    $region27: #{policy_forward.1} parent=1 // pred_check_branch
      %233 = sbr.rel (0) target = $region29
    $region28: #{policy_forward.1} parent=1 // pred_region
      %234 = dma.done [#allocation3], 256
    $region29: #{policy_forward.1} parent=1 // pred_fallthru
      _
    %235 = vsyncpa [#allocation3], 1

</llo_original>
